<compile_context>
chip_gen: v6e
topology: v6e:2x2x1
jax: 0.10.0
libtpu: 0.0.40
codegen_flags: <defaults>
</compile_context>

<pallas_src>
import functools

import jax
import jax.numpy as jnp
from jax.experimental import pallas as pl
from jax.experimental.pallas import tpu as pltpu


def _self_attention_kernel(x_ref, wq_ref, wk_ref, wv_ref, wo_ref, o_ref, *,
                           scale, causal):
    # x_ref: (S, E)   wq_ref/wk_ref: (E, Dk)   wv_ref: (E, Dv)
    # wo_ref: (Dv, Dv)   o_ref: (S, Dv)
    x = x_ref[...].astype(jnp.float32)
    wq = wq_ref[...].astype(jnp.float32)
    wk = wk_ref[...].astype(jnp.float32)
    wv = wv_ref[...].astype(jnp.float32)
    wo = wo_ref[...].astype(jnp.float32)

    # Projections (MXU, f32 accumulation).
    q = jnp.dot(x, wq, preferred_element_type=jnp.float32)   # (S, Dk)
    k = jnp.dot(x, wk, preferred_element_type=jnp.float32)   # (S, Dk)
    v = jnp.dot(x, wv, preferred_element_type=jnp.float32)   # (S, Dv)

    # Attention scores q @ k^T (contract on the feature axis; no explicit
    # transpose materialized).
    s = jax.lax.dot_general(q, k, (((1,), (1,)), ((), ())),
                            preferred_element_type=jnp.float32)  # (S, S)

    if causal:
        seq = s.shape[0]
        row = jax.lax.broadcasted_iota(jnp.int32, (seq, seq), 0)
        col = jax.lax.broadcasted_iota(jnp.int32, (seq, seq), 1)
        # Strict upper triangle -> -inf (matches torch.triu(..., diagonal=1)).
        s = jnp.where(col > row, -jnp.inf, s)

    s = s * scale

    # Numerically-stable softmax over the last (lane) axis.
    m = jnp.max(s, axis=-1, keepdims=True)
    p = jnp.exp(s - m)
    denom = jnp.sum(p, axis=-1, keepdims=True)
    p = p * pl.reciprocal(denom, approx=False)   # reciprocal off the divide path

    # Attention-weighted values and output projection.
    av = jnp.dot(p, v, preferred_element_type=jnp.float32)     # (S, Dv)
    out = jnp.dot(av, wo, preferred_element_type=jnp.float32)  # (S, Dv)

    o_ref[...] = out.astype(o_ref.dtype)


def self_attention(x, w_q, w_k, w_v, w_o, *, causal=True):
    """Fused causal self-attention.

    Args:
      x:   (B, S, E) input activations.
      w_q, w_k: (dim_k, E) projection weights (PyTorch Linear layout: out, in).
      w_v: (dim_v, E), w_o: (dim_v, dim_v).
    Returns:
      (B, S, dim_v) output, matching SelfAttention.forward(x).
    """
    B, S, E = x.shape
    dim_k = w_q.shape[0]
    dim_v = w_v.shape[0]
    assert w_q.shape == (dim_k, E) and w_k.shape == (dim_k, E)
    assert w_v.shape == (dim_v, E) and w_o.shape == (dim_v, dim_v)

    # Transpose to (in, out) once in the wrapper so the kernel computes x @ W.
    wq_t = jnp.transpose(w_q)
    wk_t = jnp.transpose(w_k)
    wv_t = jnp.transpose(w_v)
    wo_t = jnp.transpose(w_o)

    scale = float(dim_k) ** -0.5
    kernel = functools.partial(_self_attention_kernel, scale=scale,
                               causal=causal)

    return pl.pallas_call(
        kernel,
        out_shape=jax.ShapeDtypeStruct((B, S, dim_v), x.dtype),
        grid_spec=pltpu.PrefetchScalarGridSpec(
            num_scalar_prefetch=0,
            grid=(B,),
            in_specs=[
                pl.BlockSpec((None, S, E), lambda b: (b, 0, 0)),
                pl.BlockSpec((E, dim_k), lambda b: (0, 0)),
                pl.BlockSpec((E, dim_k), lambda b: (0, 0)),
                pl.BlockSpec((E, dim_v), lambda b: (0, 0)),
                pl.BlockSpec((dim_v, dim_v), lambda b: (0, 0)),
            ],
            out_specs=pl.BlockSpec((None, S, dim_v), lambda b: (b, 0, 0)),
        ),
        compiler_params=pltpu.CompilerParams(
            dimension_semantics=("parallel",),
        ),
    )(x, wq_t, wk_t, wv_t, wo_t)


if __name__ == "__main__":
    key = jax.random.PRNGKey(0)
    batch, seq, dim_emb = 2, 8, 32
    dim_k = dim_v = dim_emb

    kx, kq, kk, kv, ko = jax.random.split(key, 5)
    x = jax.random.normal(kx, (batch, seq, dim_emb), dtype=jnp.float32)

    # PyTorch Linear weight layout: (out_features, in_features).
    def init(k, shape):
        return jax.random.normal(k, shape, dtype=jnp.float32) / jnp.sqrt(shape[1])

    w_q = init(kq, (dim_k, dim_emb))
    w_k = init(kk, (dim_k, dim_emb))
    w_v = init(kv, (dim_v, dim_emb))
    w_o = init(ko, (dim_v, dim_v))

    y = self_attention(x, w_q, w_k, w_v, w_o, causal=True)
    y = jax.block_until_ready(y)

    # Pure-JAX reference mirroring the PyTorch forward exactly.
    q = jnp.einsum('bse,ke->bsk', x, w_q)
    k = jnp.einsum('bse,ke->bsk', x, w_k)
    v = jnp.einsum('bse,ve->bsv', x, w_v)
    s = jnp.einsum('bqk,bsk->bqs', q, k)
    mask = jnp.triu(jnp.ones((seq, seq), dtype=bool), k=1)
    s = jnp.where(mask[None, :, :], -jnp.inf, s)
    p = jax.nn.softmax(s * dim_k ** -0.5, axis=-1)
    y_ref = jnp.einsum('bqs,bsv->bqv', p, v)
    y_ref = jnp.einsum('bqv,wv->bqw', y_ref, w_o)

    assert jnp.allclose(y, y_ref, atol=1e-5, rtol=1e-5), "mismatch vs reference"
    print("KERNEL_OK")
</pallas_src>

<mosaic_0001>
module attributes {stable_mosaic.version = 11 : i64} {
  func.func @_self_attention_kernel(%arg0: i32, %arg1: memref<1x8x32xf32, #tpu.memory_space<vmem>>, %arg2: memref<32x32xf32, #tpu.memory_space<vmem>>, %arg3: memref<32x32xf32, #tpu.memory_space<vmem>>, %arg4: memref<32x32xf32, #tpu.memory_space<vmem>>, %arg5: memref<32x32xf32, #tpu.memory_space<vmem>>, %arg6: memref<1x8x32xf32, #tpu.memory_space<vmem>>) attributes {dimension_semantics = [#tpu.dimension_semantics<parallel>], iteration_bounds = array<i64: 2>, scalar_prefetch = 0 : i64, scratch_operands = 0 : i64, tpu.core_type = #tpu.core_type<tc>, window_params = [{transform_indices = @transform_0, window_bounds = array<i64: 1, 8, 32>}, {pipeline_mode = #tpu.pipeline_mode<synchronous>, transform_indices = @transform_1, window_bounds = array<i64: 32, 32>}, {pipeline_mode = #tpu.pipeline_mode<synchronous>, transform_indices = @transform_2, window_bounds = array<i64: 32, 32>}, {pipeline_mode = #tpu.pipeline_mode<synchronous>, transform_indices = @transform_3, window_bounds = array<i64: 32, 32>}, {pipeline_mode = #tpu.pipeline_mode<synchronous>, transform_indices = @transform_4, window_bounds = array<i64: 32, 32>}, {transform_indices = @transform_5, window_bounds = array<i64: 1, 8, 32>}]} {
    %c0 = arith.constant 0 : index
    %c0_0 = arith.constant 0 : index
    %c0_1 = arith.constant 0 : index
    %0 = vector.load %arg1[%c0, %c0_0, %c0_1] : memref<1x8x32xf32, #tpu.memory_space<vmem>>, vector<1x8x32xf32>
    %1 = vector.shape_cast %0 : vector<1x8x32xf32> to vector<8x32xf32>
    %c0_2 = arith.constant 0 : index
    %c0_3 = arith.constant 0 : index
    %2 = vector.load %arg2[%c0_2, %c0_3] : memref<32x32xf32, #tpu.memory_space<vmem>>, vector<32x32xf32>
    %c0_4 = arith.constant 0 : index
    %c0_5 = arith.constant 0 : index
    %3 = vector.load %arg3[%c0_4, %c0_5] : memref<32x32xf32, #tpu.memory_space<vmem>>, vector<32x32xf32>
    %c0_6 = arith.constant 0 : index
    %c0_7 = arith.constant 0 : index
    %4 = vector.load %arg4[%c0_6, %c0_7] : memref<32x32xf32, #tpu.memory_space<vmem>>, vector<32x32xf32>
    %c0_8 = arith.constant 0 : index
    %c0_9 = arith.constant 0 : index
    %5 = vector.load %arg5[%c0_8, %c0_9] : memref<32x32xf32, #tpu.memory_space<vmem>>, vector<32x32xf32>
    %cst = arith.constant dense<0.000000e+00> : vector<8x32xf32>
    %6 = tpu.matmul %1, %2, %cst {dimension_numbers = #tpu.dot_dimension_numbers<[1], [0], [0], [1], [0, 0, 1, 1], [], []>} : vector<8x32xf32>, vector<32x32xf32>, vector<8x32xf32> -> vector<8x32xf32>
    %cst_10 = arith.constant dense<0.000000e+00> : vector<8x32xf32>
    %7 = tpu.matmul %1, %3, %cst_10 {dimension_numbers = #tpu.dot_dimension_numbers<[1], [0], [0], [1], [0, 0, 1, 1], [], []>} : vector<8x32xf32>, vector<32x32xf32>, vector<8x32xf32> -> vector<8x32xf32>
    %cst_11 = arith.constant dense<0.000000e+00> : vector<8x32xf32>
    %8 = tpu.matmul %1, %4, %cst_11 {dimension_numbers = #tpu.dot_dimension_numbers<[1], [0], [0], [1], [0, 0, 1, 1], [], []>} : vector<8x32xf32>, vector<32x32xf32>, vector<8x32xf32> -> vector<8x32xf32>
    %cst_12 = arith.constant dense<0.000000e+00> : vector<8x8xf32>
    %9 = tpu.matmul %6, %7, %cst_12 {dimension_numbers = #tpu.dot_dimension_numbers<[1], [1], [0], [0], [0, 0, 1, 0], [], []>} : vector<8x32xf32>, vector<8x32xf32>, vector<8x8xf32> -> vector<8x8xf32>
    %10 = tpu.iota {dimensions = array<i32: 0>} : vector<8x8xi32>
    %11 = tpu.iota {dimensions = array<i32: 1>} : vector<8x8xi32>
    %12 = arith.cmpi sgt, %11, %10 : vector<8x8xi32>
    %cst_13 = arith.constant 0xFF800000 : f32
    %13 = vector.broadcast %cst_13 : f32 to vector<8x8xf32>
    %14 = arith.select %12, %13, %9 : vector<8x8xi1>, vector<8x8xf32>
    %cst_14 = arith.constant 0.176776692 : f32
    %15 = vector.broadcast %cst_14 : f32 to vector<8x8xf32>
    %16 = arith.mulf %14, %15 : vector<8x8xf32>
    %cst_15 = arith.constant dense<0xFF800000> : vector<8xf32>
    %17 = vector.multi_reduction <maximumf>, %16, %cst_15 [1] : vector<8x8xf32> to vector<8xf32>
    %18 = vector.shape_cast %17 : vector<8xf32> to vector<8x1xf32>
    %19 = vector.broadcast %18 : vector<8x1xf32> to vector<8x8xf32>
    %20 = arith.subf %16, %19 : vector<8x8xf32>
    %21 = math.exp %20 : vector<8x8xf32>
    %cst_16 = arith.constant dense<0.000000e+00> : vector<8xf32>
    %22 = vector.multi_reduction <add>, %21, %cst_16 [1] : vector<8x8xf32> to vector<8xf32>
    %23 = vector.shape_cast %22 : vector<8xf32> to vector<8x1xf32>
    %24 = tpu.reciprocal %23 : vector<8x1xf32> -> vector<8x1xf32>
    %25 = vector.broadcast %24 : vector<8x1xf32> to vector<8x8xf32>
    %26 = arith.mulf %21, %25 : vector<8x8xf32>
    %cst_17 = arith.constant dense<0.000000e+00> : vector<8x32xf32>
    %27 = tpu.matmul %26, %8, %cst_17 {dimension_numbers = #tpu.dot_dimension_numbers<[1], [0], [0], [1], [0, 0, 1, 1], [], []>} : vector<8x8xf32>, vector<8x32xf32>, vector<8x32xf32> -> vector<8x32xf32>
    %cst_18 = arith.constant dense<0.000000e+00> : vector<8x32xf32>
    %28 = tpu.matmul %27, %5, %cst_18 {dimension_numbers = #tpu.dot_dimension_numbers<[1], [0], [0], [1], [0, 0, 1, 1], [], []>} : vector<8x32xf32>, vector<32x32xf32>, vector<8x32xf32> -> vector<8x32xf32>
    %c0_19 = arith.constant 0 : index
    %c0_20 = arith.constant 0 : index
    %c0_21 = arith.constant 0 : index
    %29 = vector.load %arg6[%c0_19, %c0_20, %c0_21] : memref<1x8x32xf32, #tpu.memory_space<vmem>>, vector<1x8x32xf32>
    %30 = vector.shape_cast %29 : vector<1x8x32xf32> to vector<8x32xf32>
    %31 = vector.shape_cast %28 : vector<8x32xf32> to vector<1x8x32xf32>
    tpu.vector_store %arg6[%c0_19, %c0_20, %c0_21], %31 {strides = array<i32>} : memref<1x8x32xf32, #tpu.memory_space<vmem>>, vector<1x8x32xf32>,
    return
  }
  func.func @transform_0(%arg0: i32) -> (i32, i32, i32) {
    %c0_i32 = arith.constant 0 : i32
    %c0_i32_0 = arith.constant 0 : i32
    %c0_i32_1 = arith.constant 0 : i32
    return %arg0, %c0_i32, %c0_i32_0 : i32, i32, i32
  }
  func.func @transform_1(%arg0: i32) -> (i32, i32) {
    %c0_i32 = arith.constant 0 : i32
    %c0_i32_0 = arith.constant 0 : i32
    %c0_i32_1 = arith.constant 0 : i32
    return %c0_i32, %c0_i32_0 : i32, i32
  }
  func.func @transform_2(%arg0: i32) -> (i32, i32) {
    %c0_i32 = arith.constant 0 : i32
    %c0_i32_0 = arith.constant 0 : i32
    %c0_i32_1 = arith.constant 0 : i32
    return %c0_i32, %c0_i32_0 : i32, i32
  }
  func.func @transform_3(%arg0: i32) -> (i32, i32) {
    %c0_i32 = arith.constant 0 : i32
    %c0_i32_0 = arith.constant 0 : i32
    %c0_i32_1 = arith.constant 0 : i32
    return %c0_i32, %c0_i32_0 : i32, i32
  }
  func.func @transform_4(%arg0: i32) -> (i32, i32) {
    %c0_i32 = arith.constant 0 : i32
    %c0_i32_0 = arith.constant 0 : i32
    %c0_i32_1 = arith.constant 0 : i32
    return %c0_i32, %c0_i32_0 : i32, i32
  }
  func.func @transform_5(%arg0: i32) -> (i32, i32, i32) {
    %c0_i32 = arith.constant 0 : i32
    %c0_i32_0 = arith.constant 0 : i32
    %c0_i32_1 = arith.constant 0 : i32
    return %arg0, %c0_i32, %c0_i32_0 : i32, i32, i32
  }
}

</mosaic_0001>

<llo_original>
// kernel: tpu_custom_call.1
$region0: #{tpu_custom_call.1}
  #allocation0 [shape = 'u32[]', space=smem, size = 0x4, offset = 0x4, fixed_abs, tag = 'smem constant byte address 0x4 - core index']
  #allocation1 [shape = 'u32[144,128]{1,0:T(1,128)}', space=vmem, size = 0x12000, scoped, tag = 'internal scratch']
  %s0 = inlined_call_operand.hbm [shape: f32[2,8,32], index: 0, kind: input, shape index: {}]
  %s1 = inlined_call_operand.hbm [shape: f32[32,32], index: 1, kind: input, shape index: {}]
  %s2 = inlined_call_operand.hbm [shape: f32[32,32], index: 2, kind: input, shape index: {}]
  %s3 = inlined_call_operand.hbm [shape: f32[32,32], index: 3, kind: input, shape index: {}]
  %s4 = inlined_call_operand.hbm [shape: f32[32,32], index: 4, kind: input, shape index: {}]
  %s5 = inlined_call_operand.hbm [shape: f32[2,8,32], index: 5, kind: output, shape index: {}]
  %s6 = sld [smem:[#allocation0]]
  $region73: #{tpu_custom_call.1} parent=0
    _
  %s8 = ssub.s32 1, %s6
  %s9 = scalar_select 0, %s8, %s6
  $region1: #{tpu_custom_call.1} parent=0
    #allocation2 [shape = 'u8[8192]{0}', space=vmem, size = 0x2000, scoped, tag = 'input window, operand 0']
    #allocation3 [shape = 's32[2]{0}', space=sflag, size = 0x8, scoped, tag = 'scoped memory for tpu_custom_call.1']
    #allocation4 [shape = 's32[2]{0}', space=sflag, size = 0x8, scoped, tag = 'scoped memory for tpu_custom_call.1']
    #allocation5 [shape = 'u8[16384]{0}', space=vmem, size = 0x4000, scoped, tag = 'input window, operand 1, single buffered']
    #allocation6 [shape = 's32[1]{0}', space=sflag, size = 0x4, scoped, tag = 'scoped memory for tpu_custom_call.1']
    #allocation7 [shape = 'u8[16384]{0}', space=vmem, size = 0x4000, scoped, tag = 'input window, operand 2, single buffered']
    #allocation8 [shape = 'u8[16384]{0}', space=vmem, size = 0x4000, scoped, tag = 'input window, operand 3, single buffered']
    #allocation9 [shape = 's32[1]{0}', space=sflag, size = 0x4, scoped, tag = 'scoped memory for tpu_custom_call.1']
    #allocation10 [shape = 'u8[16384]{0}', space=vmem, size = 0x4000, scoped, tag = 'input window, operand 4, single buffered']
    #allocation11 [shape = 'u8[8192]{0}', space=vmem, size = 0x2000, scoped, tag = 'output window, operand 0']
    %10 = vsyncpa [#allocation3], 0
    %s11 = scalar_lea.sflag [#allocation3], 1
    %12 = vsyncpa %s11, 0
    %13 = vsyncpa [#allocation6], 0
    %14 = vsyncpa [#allocation9], 0
    %15 = vsyncpa [#allocation4], 0
    %s16 = scalar_lea.sflag [#allocation4], 1
    %17 = vsyncpa %s16, 0
    loop: start=0, step=1, limit=4
    $region2: #{tpu_custom_call.1} parent=1 // loop_pre_header
      _
    $region3: #{tpu_custom_call.1} parent=1 // loop_header
      %s19 = sphi 0, %s23
      %p20 = scmp.ge.s32.totalorder %s19, 4
      %s29 = sphi 0, %s31
      %s32 = sphi 0, %s29
      %s33 = sphi 0, %s32
      %s49 = sphi 0, %s33
      %s53 = sphi 0, %s53
      %s55 = sphi 0, %s53
      %s56 = sphi 0, %s55
      %s70 = sphi 0, %s56
      %s74 = sphi 0, %s74
      %s76 = sphi 0, %s74
      %s77 = sphi 0, %s76
      %s91 = sphi 0, %s77
      %s95 = sphi 0, %s95
      %s97 = sphi 0, %s95
      %s98 = sphi 0, %s97
      %s112 = sphi 0, %s98
      %s116 = sphi 0, %s116
      %s118 = sphi 0, %s116
      %s119 = sphi 0, %s118
      %s133 = sphi 0, %s119
      %s139 = sphi 0, %s141
      %s142 = sphi 0, %s139
      %s143 = sphi 0, %s142
      %s159 = sphi 0, %s143
    $region4: #{tpu_custom_call.1} parent=1 // loop_header_branch
      %22 = sbr.rel (%p20) target = $region8
    $region5: #{tpu_custom_call.1} parent=1 // loop_body
      %s24 = ssub.s32 %s19, 1
      %s25 = ssub.s32 %s19, 2
      %s26 = sadd.s32 %s19, 1
      %s27 = ssub.s32 %s19, %s26
      %p28 = scmp.eq.s32.totalorder %s27, 0
      %s30 = sadd.s32 %s29, 1
      %s31 = scalar_select %p28, %s29, %s30
      %p34 = pneg %p28
      %p35 = scmp.eq.s32.totalorder %s19, 1
      %p36 = por %p34, %p35
      %p37 = scmp.ne.s32.totalorder %s29, %s32
      %p38 = scmp.eq.s32.totalorder %s19, 0
      %p39 = por %p37, %p38
      %p40 = scmp.ne.s32.totalorder %s29, %s32
      %p41 = scmp.eq.s32.totalorder %s24, 1
      %p42 = por %p40, %p41
      %p43 = scmp.ne.s32.totalorder %s32, %s33
      %p44 = scmp.eq.s32.totalorder %s24, 0
      %p45 = por %p43, %p44
      %p46 = scmp.ne.s32.totalorder %s32, %s33
      %p47 = scmp.eq.s32.totalorder %s25, 1
      %p48 = por %p46, %p47
      %p50 = scmp.ne.s32.totalorder %s33, %s49
      %p51 = scmp.eq.s32.totalorder %s25, 0
      %p52 = por %p50, %p51
      %s54 = sadd.s32 %s53, 1
      %p57 = scmp.eq.s32.totalorder %s19, 1
      %p58 = scmp.ne.s32.totalorder %s53, %s55
      %p59 = scmp.eq.s32.totalorder %s19, 0
      %p60 = por %p58, %p59
      %p61 = scmp.ne.s32.totalorder %s53, %s55
      %p62 = scmp.eq.s32.totalorder %s24, 1
      %p63 = por %p61, %p62
      %p64 = scmp.ne.s32.totalorder %s55, %s56
      %p65 = scmp.eq.s32.totalorder %s24, 0
      %p66 = por %p64, %p65
      %p67 = scmp.ne.s32.totalorder %s55, %s56
      %p68 = scmp.eq.s32.totalorder %s25, 1
      %p69 = por %p67, %p68
      %p71 = scmp.ne.s32.totalorder %s56, %s70
      %p72 = scmp.eq.s32.totalorder %s25, 0
      %p73 = por %p71, %p72
      %s75 = sadd.s32 %s74, 1
      %p78 = scmp.eq.s32.totalorder %s19, 1
      %p79 = scmp.ne.s32.totalorder %s74, %s76
      %p80 = scmp.eq.s32.totalorder %s19, 0
      %p81 = por %p79, %p80
      %p82 = scmp.ne.s32.totalorder %s74, %s76
      %p83 = scmp.eq.s32.totalorder %s24, 1
      %p84 = por %p82, %p83
      %p85 = scmp.ne.s32.totalorder %s76, %s77
      %p86 = scmp.eq.s32.totalorder %s24, 0
      %p87 = por %p85, %p86
      %p88 = scmp.ne.s32.totalorder %s76, %s77
      %p89 = scmp.eq.s32.totalorder %s25, 1
      %p90 = por %p88, %p89
      %p92 = scmp.ne.s32.totalorder %s77, %s91
      %p93 = scmp.eq.s32.totalorder %s25, 0
      %p94 = por %p92, %p93
      %s96 = sadd.s32 %s95, 1
      %p99 = scmp.eq.s32.totalorder %s19, 1
      %p100 = scmp.ne.s32.totalorder %s95, %s97
      %p101 = scmp.eq.s32.totalorder %s19, 0
      %p102 = por %p100, %p101
      %p103 = scmp.ne.s32.totalorder %s95, %s97
      %p104 = scmp.eq.s32.totalorder %s24, 1
      %p105 = por %p103, %p104
      %p106 = scmp.ne.s32.totalorder %s97, %s98
      %p107 = scmp.eq.s32.totalorder %s24, 0
      %p108 = por %p106, %p107
      %p109 = scmp.ne.s32.totalorder %s97, %s98
      %p110 = scmp.eq.s32.totalorder %s25, 1
      %p111 = por %p109, %p110
      %p113 = scmp.ne.s32.totalorder %s98, %s112
      %p114 = scmp.eq.s32.totalorder %s25, 0
      %p115 = por %p113, %p114
      %s117 = sadd.s32 %s116, 1
      %p120 = scmp.eq.s32.totalorder %s19, 1
      %p121 = scmp.ne.s32.totalorder %s116, %s118
      %p122 = scmp.eq.s32.totalorder %s19, 0
      %p123 = por %p121, %p122
      %p124 = scmp.ne.s32.totalorder %s116, %s118
      %p125 = scmp.eq.s32.totalorder %s24, 1
      %p126 = por %p124, %p125
      %p127 = scmp.ne.s32.totalorder %s118, %s119
      %p128 = scmp.eq.s32.totalorder %s24, 0
      %p129 = por %p127, %p128
      %p130 = scmp.ne.s32.totalorder %s118, %s119
      %p131 = scmp.eq.s32.totalorder %s25, 1
      %p132 = por %p130, %p131
      %p134 = scmp.ne.s32.totalorder %s119, %s133
      %p135 = scmp.eq.s32.totalorder %s25, 0
      %p136 = por %p134, %p135
      %s137 = ssub.s32 %s19, %s26
      %p138 = scmp.eq.s32.totalorder %s137, 0
      %s140 = sadd.s32 %s139, 1
      %s141 = scalar_select %p138, %s139, %s140
      %p144 = pneg %p138
      %p145 = scmp.eq.s32.totalorder %s19, 1
      %p146 = por %p144, %p145
      %p147 = scmp.ne.s32.totalorder %s139, %s142
      %p148 = scmp.eq.s32.totalorder %s19, 0
      %p149 = por %p147, %p148
      %p150 = scmp.ne.s32.totalorder %s139, %s142
      %p151 = scmp.eq.s32.totalorder %s24, 1
      %p152 = por %p150, %p151
      %p153 = scmp.ne.s32.totalorder %s142, %s143
      %p154 = scmp.eq.s32.totalorder %s24, 0
      %p155 = por %p153, %p154
      %p156 = scmp.ne.s32.totalorder %s142, %s143
      %p157 = scmp.eq.s32.totalorder %s25, 1
      %p158 = por %p156, %p157
      %p160 = scmp.ne.s32.totalorder %s143, %s159
      %p161 = scmp.eq.s32.totalorder %s25, 0
      %p162 = por %p160, %p161
      %p163 = scmp.le.s32.totalorder 1, %s19
      %p164 = scmp.lt.s32.totalorder %s19, 3
      %p165 = pnand %p163, %p164
      %p166 = pneg %p165
      // Predicated region
      $region9: #{tpu_custom_call.1} parent=5 // pred_check
        _
      $region10: #{tpu_custom_call.1} parent=5 // pred_check_branch
        %168 = sbr.rel (%p165) target = $region12
      $region11: #{tpu_custom_call.1} parent=5 // pred_region
        %s169 = ssub.s32 %s19, 1
        // Predicated region
        $region13: #{tpu_custom_call.1} parent=11 // pred_check
          %p170 = pneg %p66
        $region14: #{tpu_custom_call.1} parent=11 // pred_check_branch
          %172 = sbr.rel (%p170) target = $region16
        $region15: #{tpu_custom_call.1} parent=11 // pred_region
          %s174 = ssub.s32 512, 512
          %175 = vsyncadd [#allocation6], %s174
          %s176 = sshll.u32 [#allocation5], 4
          %s177 = int_to_ptr.vmem [resolvable:$true] %s176
          %182 = dma.hbm_to_vmem [thread:$0]  %s1, 512, %s177, [#allocation6], 128, 128, 8
        $region16: #{tpu_custom_call.1} parent=11 // pred_fallthru
          _
        // Predicated region
        $region17: #{tpu_custom_call.1} parent=11 // pred_check
          %p183 = pneg %p87
        $region18: #{tpu_custom_call.1} parent=11 // pred_check_branch
          %185 = sbr.rel (%p183) target = $region20
        $region19: #{tpu_custom_call.1} parent=11 // pred_region
          %s187 = ssub.s32 512, 512
          %188 = vsyncadd [#allocation6], %s187
          %s189 = sshll.u32 [#allocation7], 4
          %s190 = int_to_ptr.vmem [resolvable:$true] %s189
          %195 = dma.hbm_to_vmem [thread:$0]  %s2, 512, %s190, [#allocation6], 128, 128, 8
        $region20: #{tpu_custom_call.1} parent=11 // pred_fallthru
          _
        // Predicated region
        $region21: #{tpu_custom_call.1} parent=11 // pred_check
          %p196 = pneg %p108
        $region22: #{tpu_custom_call.1} parent=11 // pred_check_branch
          %198 = sbr.rel (%p196) target = $region24
        $region23: #{tpu_custom_call.1} parent=11 // pred_region
          %s200 = ssub.s32 512, 512
          %201 = vsyncadd [#allocation9], %s200
          %s202 = sshll.u32 [#allocation8], 4
          %s203 = int_to_ptr.vmem [resolvable:$true] %s202
          %208 = dma.hbm_to_vmem [thread:$0]  %s3, 512, %s203, [#allocation9], 128, 128, 8
        $region24: #{tpu_custom_call.1} parent=11 // pred_fallthru
          _
        // Predicated region
        $region25: #{tpu_custom_call.1} parent=11 // pred_check
          %p209 = pneg %p129
        $region26: #{tpu_custom_call.1} parent=11 // pred_check_branch
          %211 = sbr.rel (%p209) target = $region28
        $region27: #{tpu_custom_call.1} parent=11 // pred_region
          %s213 = ssub.s32 512, 512
          %214 = vsyncadd [#allocation9], %s213
          %s215 = sshll.u32 [#allocation10], 4
          %s216 = int_to_ptr.vmem [resolvable:$true] %s215
          %221 = dma.hbm_to_vmem [thread:$0]  %s4, 512, %s216, [#allocation9], 128, 128, 8
        $region28: #{tpu_custom_call.1} parent=11 // pred_fallthru
          _
      $region12: #{tpu_custom_call.1} parent=5 // pred_fallthru
        _
      %p222 = scmp.lt.s32.totalorder %s19, 2
      // Predicated region
      $region29: #{tpu_custom_call.1} parent=5 // pred_check
        %p223 = pneg %p222
      $region30: #{tpu_custom_call.1} parent=5 // pred_check_branch
        %225 = sbr.rel (%p223) target = $region32
      $region31: #{tpu_custom_call.1} parent=5 // pred_region
        // Predicated region
        $region33: #{tpu_custom_call.1} parent=31 // pred_check
          %p226 = pneg %p39
        $region34: #{tpu_custom_call.1} parent=31 // pred_check_branch
          %228 = sbr.rel (%p226) target = $region36
        $region35: #{tpu_custom_call.1} parent=31 // pred_region
          %s229 = sand.u32 %s29, 1
          %s230 = scalar_lea.sflag [#allocation3], %s229
          %s231 = sand.u32 %s29, 1
          %s232 = smul.addr %s231, 8
          %s233 = scalar_lea.vmem [#allocation2], %s232
          %s235 = ssub.s32 128, 128
          %236 = vsyncadd %s230, %s235
          %s237 = smul.addr %s19, 128
          %s238 = scalar_lea.hbm %s0, %s237
          %s240 = sshll.u32 %s233, 4
          %s241 = int_to_ptr.vmem [resolvable:$true] %s240
          %243 = dma.hbm_to_vmem [thread:$0]  %s238, 128, %s241, %s230
        $region36: #{tpu_custom_call.1} parent=31 // pred_fallthru
          _
      $region32: #{tpu_custom_call.1} parent=5 // pred_fallthru
        _
      %p244 = scmp.le.s32.totalorder 1, %s19
      %p245 = scmp.lt.s32.totalorder %s19, 3
      %p246 = pnand %p244, %p245
      %p247 = pneg %p246
      // Predicated region
      $region37: #{tpu_custom_call.1} parent=5 // pred_check
        _
      $region38: #{tpu_custom_call.1} parent=5 // pred_check_branch
        %249 = sbr.rel (%p246) target = $region40
      $region39: #{tpu_custom_call.1} parent=5 // pred_region
        %s250 = ssub.s32 %s19, 1
        %s251 = sand.u32 %s32, 1
        %s252 = scalar_lea.sflag [#allocation3], %s251
        %s253 = sand.u32 %s32, 1
        %s254 = smul.addr %s253, 8
        %s255 = scalar_lea.vmem [#allocation2], %s254
        // Predicated region
        $region41: #{tpu_custom_call.1} parent=39 // pred_check
          %p256 = pneg %p45
        $region42: #{tpu_custom_call.1} parent=39 // pred_check_branch
          %258 = sbr.rel (%p256) target = $region44
        $region43: #{tpu_custom_call.1} parent=39 // pred_region
          %259 = dma.done %s252, 128
        $region44: #{tpu_custom_call.1} parent=39 // pred_fallthru
          _
        // Predicated region
        $region45: #{tpu_custom_call.1} parent=39 // pred_check
          %p260 = pneg %p66
        $region46: #{tpu_custom_call.1} parent=39 // pred_check_branch
          %262 = sbr.rel (%p260) target = $region48
        $region47: #{tpu_custom_call.1} parent=39 // pred_region
          %263 = dma.done [#allocation6], 512
        $region48: #{tpu_custom_call.1} parent=39 // pred_fallthru
          _
        // Predicated region
        $region49: #{tpu_custom_call.1} parent=39 // pred_check
          %p264 = pneg %p87
        $region50: #{tpu_custom_call.1} parent=39 // pred_check_branch
          %266 = sbr.rel (%p264) target = $region52
        $region51: #{tpu_custom_call.1} parent=39 // pred_region
          %267 = dma.done [#allocation6], 512
        $region52: #{tpu_custom_call.1} parent=39 // pred_fallthru
          _
        // Predicated region
        $region53: #{tpu_custom_call.1} parent=39 // pred_check
          %p268 = pneg %p108
        $region54: #{tpu_custom_call.1} parent=39 // pred_check_branch
          %270 = sbr.rel (%p268) target = $region56
        $region55: #{tpu_custom_call.1} parent=39 // pred_region
          %271 = dma.done [#allocation9], 512
        $region56: #{tpu_custom_call.1} parent=39 // pred_fallthru
          _
        // Predicated region
        $region57: #{tpu_custom_call.1} parent=39 // pred_check
          %p272 = pneg %p129
        $region58: #{tpu_custom_call.1} parent=39 // pred_check_branch
          %274 = sbr.rel (%p272) target = $region60
        $region59: #{tpu_custom_call.1} parent=39 // pred_region
          %275 = dma.done [#allocation9], 512
        $region60: #{tpu_custom_call.1} parent=39 // pred_fallthru
          _
        %s276 = sand.u32 %s32, 1
        %s277 = scalar_lea.sflag [#allocation3], %s276
        %s278 = sand.u32 %s32, 1
        %s279 = smul.addr %s278, 8
        %s280 = scalar_lea.vmem [#allocation2], %s279
        %p281 = pneg %p45
        %p282 = pneg %p42
        %p283 = pneg %p66
        %p284 = pneg %p63
        %p285 = pneg %p87
        %p286 = pneg %p84
        %p287 = pneg %p108
        %p288 = pneg %p105
        %p289 = pneg %p129
        %p290 = pneg %p126
        %p291 = pneg %p155
        %p292 = pneg %p152
        %s293 = sand.u32 %s142, 1
        %s294 = scalar_lea.sflag [#allocation4], %s293
        %s295 = sand.u32 %s142, 1
        %s296 = smul.addr %s295, 8
        %s297 = scalar_lea.vmem [#allocation11], %s296
        %v298 = vld [vmem:[%s255] sm:$0xff]
        %v299 = vld [vmem:[#allocation5] sm:$0xff]
        %v300 = vld [vmem:[#allocation5 + $0x8] sm:$0xff]
        %v301 = vld [vmem:[#allocation5 + $0x10] sm:$0xff]
        %v302 = vld [vmem:[#allocation5 + $0x18] sm:$0xff]
        %v303 = vld [vmem:[#allocation7] sm:$0xff]
        %v304 = vld [vmem:[#allocation7 + $0x8] sm:$0xff]
        %v305 = vld [vmem:[#allocation7 + $0x10] sm:$0xff]
        %v306 = vld [vmem:[#allocation7 + $0x18] sm:$0xff]
        %v307 = vld [vmem:[#allocation8] sm:$0xff]
        %v308 = vld [vmem:[#allocation8 + $0x8] sm:$0xff]
        %v309 = vld [vmem:[#allocation8 + $0x10] sm:$0xff]
        %v310 = vld [vmem:[#allocation8 + $0x18] sm:$0xff]
        %v311 = vld [vmem:[#allocation10] sm:$0xff]
        %v312 = vld [vmem:[#allocation10 + $0x8] sm:$0xff]
        %v313 = vld [vmem:[#allocation10 + $0x10] sm:$0xff]
        %v314 = vld [vmem:[#allocation10 + $0x18] sm:$0xff]
        %vm315 = vcmask 261120
        %v317 = vsel %vm315, %v298, 0
        %319 = vmatprep.subr.mxu0 0.0
        %320 = vmatpush1.msra.mxu0 0.0
        %321 = vmatprep.subr.mxu0 0.0
        %322 = vmatpush1.msra.mxu0 0.0
        %323 = vmatprep.subr.mxu0 0.0
        %324 = vmatpush1.msra.mxu0 0.0
        %325 = vmatprep.subr.mxu0 0.0
        %326 = vmatpush1.msra.mxu0 0.0
        %327 = vmatprep.subr.mxu0 0.0
        %328 = vmatpush1.msra.mxu0 0.0
        %329 = vmatprep.subr.mxu0 0.0
        %330 = vmatpush1.msra.mxu0 0.0
        %331 = vmatprep.subr.mxu0 0.0
        %332 = vmatpush1.msra.mxu0 0.0
        %333 = vmatprep.subr.mxu0 0.0
        %334 = vmatpush1.msra.mxu0 0.0
        %335 = vmatprep.subr.mxu0 0.0
        %336 = vmatpush1.msra.mxu0 0.0
        %337 = vmatprep.subr.mxu0 0.0
        %338 = vmatpush1.msra.mxu0 0.0
        %339 = vmatprep.subr.mxu0 0.0
        %340 = vmatpush1.msra.mxu0 0.0
        %341 = vmatprep.subr.mxu0 0.0
        %342 = vmatpush1.msra.mxu0 0.0
        %343 = vmatprep.subr.mxu0 0.0
        %344 = vmatpush1.msra.mxu0 %v302
        %345 = vmatprep.subr.mxu0 0.0
        %346 = vmatpush1.msra.mxu0 %v301
        %347 = vmatprep.subr.mxu0 0.0
        %348 = vmatpush1.msra.mxu0 %v300
        %349 = vmatprep.subr.mxu0 0.0
        %350 = vmatpush1.msra.mxu0 %v299
        %351 = vmatprep.subr.mxu0 0.0
        %352 = vmatpush2.msra.mxu0 0.0
        %353 = vmatprep.subr.mxu0 0.0
        %354 = vmatpush2.msra.mxu0 0.0
        %355 = vmatprep.subr.mxu0 0.0
        %356 = vmatpush2.msra.mxu0 0.0
        %357 = vmatprep.subr.mxu0 0.0
        %358 = vmatpush2.msra.mxu0 0.0
        %359 = vmatprep.subr.mxu0 0.0
        %360 = vmatpush2.msra.mxu0 0.0
        %361 = vmatprep.subr.mxu0 0.0
        %362 = vmatpush2.msra.mxu0 0.0
        %363 = vmatprep.subr.mxu0 0.0
        %364 = vmatpush2.msra.mxu0 0.0
        %365 = vmatprep.subr.mxu0 0.0
        %366 = vmatpush2.msra.mxu0 0.0
        %367 = vmatprep.subr.mxu0 0.0
        %368 = vmatpush2.msra.mxu0 0.0
        %369 = vmatprep.subr.mxu0 0.0
        %370 = vmatpush2.msra.mxu0 0.0
        %371 = vmatprep.subr.mxu0 0.0
        %372 = vmatpush2.msra.mxu0 0.0
        %373 = vmatprep.subr.mxu0 0.0
        %374 = vmatpush2.msra.mxu0 0.0
        %375 = vmatprep.subr.mxu0 0.0
        %376 = vmatpush2.msra.mxu0 0.0
        %377 = vmatprep.subr.mxu0 0.0
        %378 = vmatpush2.msra.mxu0 0.0
        %379 = vmatprep.subr.mxu0 0.0
        %380 = vmatpush2.msra.mxu0 0.0
        %381 = vmatprep.subr.mxu0 0.0
        %382 = vmatpush2.msra.mxu0 0.0
        %383 = vmatprep.mubr.f32.mxu0 0.0
        %384 = vmatmul.mubr.f32.gmra.mxu0 %v317
        %v385 = vpop.f32.mrf.mxu0
        %v386 = vadd.f32 0.0, %v385
        %v387 = vpop.f32.mrf.mxu0
        %388 = vdwg.mxu0
        %389 = vmatprep.subr.mxu0 0.0
        %390 = vmatpush1.msra.mxu0 0.0
        %391 = vmatprep.subr.mxu0 0.0
        %392 = vmatpush1.msra.mxu0 0.0
        %393 = vmatprep.subr.mxu0 0.0
        %394 = vmatpush1.msra.mxu0 0.0
        %395 = vmatprep.subr.mxu0 0.0
        %396 = vmatpush1.msra.mxu0 0.0
        %397 = vmatprep.subr.mxu0 0.0
        %398 = vmatpush1.msra.mxu0 0.0
        %399 = vmatprep.subr.mxu0 0.0
        %400 = vmatpush1.msra.mxu0 0.0
        %401 = vmatprep.subr.mxu0 0.0
        %402 = vmatpush1.msra.mxu0 0.0
        %403 = vmatprep.subr.mxu0 0.0
        %404 = vmatpush1.msra.mxu0 0.0
        %405 = vmatprep.subr.mxu0 0.0
        %406 = vmatpush1.msra.mxu0 0.0
        %407 = vmatprep.subr.mxu0 0.0
        %408 = vmatpush1.msra.mxu0 0.0
        %409 = vmatprep.subr.mxu0 0.0
        %410 = vmatpush1.msra.mxu0 0.0
        %411 = vmatprep.subr.mxu0 0.0
        %412 = vmatpush1.msra.mxu0 0.0
        %413 = vmatprep.subr.mxu0 0.0
        %414 = vmatpush1.msra.mxu0 %v306
        %415 = vmatprep.subr.mxu0 0.0
        %416 = vmatpush1.msra.mxu0 %v305
        %417 = vmatprep.subr.mxu0 0.0
        %418 = vmatpush1.msra.mxu0 %v304
        %419 = vmatprep.subr.mxu0 0.0
        %420 = vmatpush1.msra.mxu0 %v303
        %421 = vmatprep.subr.mxu0 0.0
        %422 = vmatpush2.msra.mxu0 0.0
        %423 = vmatprep.subr.mxu0 0.0
        %424 = vmatpush2.msra.mxu0 0.0
        %425 = vmatprep.subr.mxu0 0.0
        %426 = vmatpush2.msra.mxu0 0.0
        %427 = vmatprep.subr.mxu0 0.0
        %428 = vmatpush2.msra.mxu0 0.0
        %429 = vmatprep.subr.mxu0 0.0
        %430 = vmatpush2.msra.mxu0 0.0
        %431 = vmatprep.subr.mxu0 0.0
        %432 = vmatpush2.msra.mxu0 0.0
        %433 = vmatprep.subr.mxu0 0.0
        %434 = vmatpush2.msra.mxu0 0.0
        %435 = vmatprep.subr.mxu0 0.0
        %436 = vmatpush2.msra.mxu0 0.0
        %437 = vmatprep.subr.mxu0 0.0
        %438 = vmatpush2.msra.mxu0 0.0
        %439 = vmatprep.subr.mxu0 0.0
        %440 = vmatpush2.msra.mxu0 0.0
        %441 = vmatprep.subr.mxu0 0.0
        %442 = vmatpush2.msra.mxu0 0.0
        %443 = vmatprep.subr.mxu0 0.0
        %444 = vmatpush2.msra.mxu0 0.0
        %445 = vmatprep.subr.mxu0 0.0
        %446 = vmatpush2.msra.mxu0 0.0
        %447 = vmatprep.subr.mxu0 0.0
        %448 = vmatpush2.msra.mxu0 0.0
        %449 = vmatprep.subr.mxu0 0.0
        %450 = vmatpush2.msra.mxu0 0.0
        %451 = vmatprep.subr.mxu0 0.0
        %452 = vmatpush2.msra.mxu0 0.0
        %453 = vmatprep.mubr.f32.mxu0 0.0
        %454 = vmatmul.mubr.f32.gmra.mxu0 %v317
        %v455 = vpop.f32.mrf.mxu0
        %v456 = vadd.f32 0.0, %v455
        %v457 = vpop.f32.mrf.mxu0
        %458 = vdwg.mxu0
        %459 = vmatprep.subr.mxu0 0.0
        %460 = vmatpush1.msra.mxu0 0.0
        %461 = vmatprep.subr.mxu0 0.0
        %462 = vmatpush1.msra.mxu0 0.0
        %463 = vmatprep.subr.mxu0 0.0
        %464 = vmatpush1.msra.mxu0 0.0
        %465 = vmatprep.subr.mxu0 0.0
        %466 = vmatpush1.msra.mxu0 0.0
        %467 = vmatprep.subr.mxu0 0.0
        %468 = vmatpush1.msra.mxu0 0.0
        %469 = vmatprep.subr.mxu0 0.0
        %470 = vmatpush1.msra.mxu0 0.0
        %471 = vmatprep.subr.mxu0 0.0
        %472 = vmatpush1.msra.mxu0 0.0
        %473 = vmatprep.subr.mxu0 0.0
        %474 = vmatpush1.msra.mxu0 0.0
        %475 = vmatprep.subr.mxu0 0.0
        %476 = vmatpush1.msra.mxu0 0.0
        %477 = vmatprep.subr.mxu0 0.0
        %478 = vmatpush1.msra.mxu0 0.0
        %479 = vmatprep.subr.mxu0 0.0
        %480 = vmatpush1.msra.mxu0 0.0
        %481 = vmatprep.subr.mxu0 0.0
        %482 = vmatpush1.msra.mxu0 0.0
        %483 = vmatprep.subr.mxu0 0.0
        %484 = vmatpush1.msra.mxu0 %v310
        %485 = vmatprep.subr.mxu0 0.0
        %486 = vmatpush1.msra.mxu0 %v309
        %487 = vmatprep.subr.mxu0 0.0
        %488 = vmatpush1.msra.mxu0 %v308
        %489 = vmatprep.subr.mxu0 0.0
        %490 = vmatpush1.msra.mxu0 %v307
        %491 = vmatprep.subr.mxu0 0.0
        %492 = vmatpush2.msra.mxu0 0.0
        %493 = vmatprep.subr.mxu0 0.0
        %494 = vmatpush2.msra.mxu0 0.0
        %495 = vmatprep.subr.mxu0 0.0
        %496 = vmatpush2.msra.mxu0 0.0
        %497 = vmatprep.subr.mxu0 0.0
        %498 = vmatpush2.msra.mxu0 0.0
        %499 = vmatprep.subr.mxu0 0.0
        %500 = vmatpush2.msra.mxu0 0.0
        %501 = vmatprep.subr.mxu0 0.0
        %502 = vmatpush2.msra.mxu0 0.0
        %503 = vmatprep.subr.mxu0 0.0
        %504 = vmatpush2.msra.mxu0 0.0
        %505 = vmatprep.subr.mxu0 0.0
        %506 = vmatpush2.msra.mxu0 0.0
        %507 = vmatprep.subr.mxu0 0.0
        %508 = vmatpush2.msra.mxu0 0.0
        %509 = vmatprep.subr.mxu0 0.0
        %510 = vmatpush2.msra.mxu0 0.0
        %511 = vmatprep.subr.mxu0 0.0
        %512 = vmatpush2.msra.mxu0 0.0
        %513 = vmatprep.subr.mxu0 0.0
        %514 = vmatpush2.msra.mxu0 0.0
        %515 = vmatprep.subr.mxu0 0.0
        %516 = vmatpush2.msra.mxu0 0.0
        %517 = vmatprep.subr.mxu0 0.0
        %518 = vmatpush2.msra.mxu0 0.0
        %519 = vmatprep.subr.mxu0 0.0
        %520 = vmatpush2.msra.mxu0 0.0
        %521 = vmatprep.subr.mxu0 0.0
        %522 = vmatpush2.msra.mxu0 0.0
        %523 = vmatprep.mubr.f32.mxu0 0.0
        %524 = vmatmul.mubr.f32.gmra.mxu0 %v317
        %v525 = vpop.f32.mrf.mxu0
        %v526 = vadd.f32 0.0, %v525
        %v527 = vpop.f32.mrf.mxu0
        %528 = vdwg.mxu0
        %v530 = vsel %vm315, %v386, 0
        %v533 = vsel %vm315, %v456, 0
        %535 = vmatprep.subr.mxu0 0.0
        %536 = vmatpush1.xpose.msra.mxu0 0.0
        %537 = vmatprep.subr.mxu0 0.0
        %538 = vmatpush1.xpose.msra.mxu0 0.0
        %539 = vmatprep.subr.mxu0 0.0
        %540 = vmatpush1.xpose.msra.mxu0 0.0
        %541 = vmatprep.subr.mxu0 0.0
        %542 = vmatpush1.xpose.msra.mxu0 0.0
        %543 = vmatprep.subr.mxu0 0.0
        %544 = vmatpush1.xpose.msra.mxu0 0.0
        %545 = vmatprep.subr.mxu0 0.0
        %546 = vmatpush1.xpose.msra.mxu0 0.0
        %547 = vmatprep.subr.mxu0 0.0
        %548 = vmatpush1.xpose.msra.mxu0 0.0
        %549 = vmatprep.subr.mxu0 0.0
        %550 = vmatpush1.xpose.msra.mxu0 0.0
        %551 = vmatprep.subr.mxu0 0.0
        %552 = vmatpush1.xpose.msra.mxu0 0.0
        %553 = vmatprep.subr.mxu0 0.0
        %554 = vmatpush1.xpose.msra.mxu0 0.0
        %555 = vmatprep.subr.mxu0 0.0
        %556 = vmatpush1.xpose.msra.mxu0 0.0
        %557 = vmatprep.subr.mxu0 0.0
        %558 = vmatpush1.xpose.msra.mxu0 0.0
        %559 = vmatprep.subr.mxu0 0.0
        %560 = vmatpush1.xpose.msra.mxu0 0.0
        %561 = vmatprep.subr.mxu0 0.0
        %562 = vmatpush1.xpose.msra.mxu0 0.0
        %563 = vmatprep.subr.mxu0 0.0
        %564 = vmatpush1.xpose.msra.mxu0 0.0
        %565 = vmatprep.subr.mxu0 0.0
        %566 = vmatpush1.xpose.msra.mxu0 %v533
        %567 = vmatprep.subr.mxu0 0.0
        %568 = vmatpush2.xpose.msra.mxu0 0.0
        %569 = vmatprep.subr.mxu0 0.0
        %570 = vmatpush2.xpose.msra.mxu0 0.0
        %571 = vmatprep.subr.mxu0 0.0
        %572 = vmatpush2.xpose.msra.mxu0 0.0
        %573 = vmatprep.subr.mxu0 0.0
        %574 = vmatpush2.xpose.msra.mxu0 0.0
        %575 = vmatprep.subr.mxu0 0.0
        %576 = vmatpush2.xpose.msra.mxu0 0.0
        %577 = vmatprep.subr.mxu0 0.0
        %578 = vmatpush2.xpose.msra.mxu0 0.0
        %579 = vmatprep.subr.mxu0 0.0
        %580 = vmatpush2.xpose.msra.mxu0 0.0
        %581 = vmatprep.subr.mxu0 0.0
        %582 = vmatpush2.xpose.msra.mxu0 0.0
        %583 = vmatprep.subr.mxu0 0.0
        %584 = vmatpush2.xpose.msra.mxu0 0.0
        %585 = vmatprep.subr.mxu0 0.0
        %586 = vmatpush2.xpose.msra.mxu0 0.0
        %587 = vmatprep.subr.mxu0 0.0
        %588 = vmatpush2.xpose.msra.mxu0 0.0
        %589 = vmatprep.subr.mxu0 0.0
        %590 = vmatpush2.xpose.msra.mxu0 0.0
        %591 = vmatprep.subr.mxu0 0.0
        %592 = vmatpush2.xpose.msra.mxu0 0.0
        %593 = vmatprep.subr.mxu0 0.0
        %594 = vmatpush2.xpose.msra.mxu0 0.0
        %595 = vmatprep.subr.mxu0 0.0
        %596 = vmatpush2.xpose.msra.mxu0 0.0
        %597 = vmatprep.subr.mxu0 0.0
        %598 = vmatpush2.xpose.msra.mxu0 0.0
        %599 = vmatprep.mubr.f32.mxu0 0.0
        %600 = vmatmul.mubr.f32.gmra.mxu0 %v530
        %v601 = vpop.f32.mrf.mxu0
        %v602 = vadd.f32 0.0, %v601
        %v603 = vpop.f32.mrf.mxu0
        %604 = vdwg.mxu0
        %v605 = vlaneseq
        %v606 = vshrl.u32 %v605, 7
        %v607 = vlaneseq
        %v608 = vand.u32 %v607, 127
        %vm609 = vcmp.gt.s32.totalorder %v608, %v606
        %v610 = vsel %vm609, -inf, %v602
        %v611 = vmul.f32 %v610, 0.17677669
        %vm612 = vcmask 64512
        %v613 = vsel %vm612, %v611, -inf
        %614 = vmax.xlane.f32.xlu0 %v613
        %v615 = vpop.xlane.xlu0 %614
        %v616 = vsub.f32 %v611, %v615
        %v617 = vmul.f32 %v616, 1.442695
        %v618 = vpow.pop %v617
        %v619 = vsel %vm612, %v618, 0.0
        %620 = vadd.xlane.f32.xlu0 %v619
        %v621 = vpop.xlane.xlu0 %620
        %v622 = vrcp.pop %v621
        %v623 = vmul.f32 %v618, %v622
        %v625 = vsel %vm612, %v623, 0
        %627 = vmatprep.subr.mxu0 0.0
        %628 = vmatpush1.msra.mxu0 0.0
        %629 = vmatprep.subr.mxu0 0.0
        %630 = vmatpush1.msra.mxu0 0.0
        %631 = vmatprep.subr.mxu0 0.0
        %632 = vmatpush1.msra.mxu0 0.0
        %633 = vmatprep.subr.mxu0 0.0
        %634 = vmatpush1.msra.mxu0 0.0
        %635 = vmatprep.subr.mxu0 0.0
        %636 = vmatpush1.msra.mxu0 0.0
        %637 = vmatprep.subr.mxu0 0.0
        %638 = vmatpush1.msra.mxu0 0.0
        %639 = vmatprep.subr.mxu0 0.0
        %640 = vmatpush1.msra.mxu0 0.0
        %641 = vmatprep.subr.mxu0 0.0
        %642 = vmatpush1.msra.mxu0 0.0
        %643 = vmatprep.subr.mxu0 0.0
        %644 = vmatpush1.msra.mxu0 0.0
        %645 = vmatprep.subr.mxu0 0.0
        %646 = vmatpush1.msra.mxu0 0.0
        %647 = vmatprep.subr.mxu0 0.0
        %648 = vmatpush1.msra.mxu0 0.0
        %649 = vmatprep.subr.mxu0 0.0
        %650 = vmatpush1.msra.mxu0 0.0
        %651 = vmatprep.subr.mxu0 0.0
        %652 = vmatpush1.msra.mxu0 0.0
        %653 = vmatprep.subr.mxu0 0.0
        %654 = vmatpush1.msra.mxu0 0.0
        %655 = vmatprep.subr.mxu0 0.0
        %656 = vmatpush1.msra.mxu0 0.0
        %657 = vmatprep.subr.mxu0 0.0
        %658 = vmatpush1.msra.mxu0 %v526
        %659 = vmatprep.subr.mxu0 0.0
        %660 = vmatpush2.msra.mxu0 0.0
        %661 = vmatprep.subr.mxu0 0.0
        %662 = vmatpush2.msra.mxu0 0.0
        %663 = vmatprep.subr.mxu0 0.0
        %664 = vmatpush2.msra.mxu0 0.0
        %665 = vmatprep.subr.mxu0 0.0
        %666 = vmatpush2.msra.mxu0 0.0
        %667 = vmatprep.subr.mxu0 0.0
        %668 = vmatpush2.msra.mxu0 0.0
        %669 = vmatprep.subr.mxu0 0.0
        %670 = vmatpush2.msra.mxu0 0.0
        %671 = vmatprep.subr.mxu0 0.0
        %672 = vmatpush2.msra.mxu0 0.0
        %673 = vmatprep.subr.mxu0 0.0
        %674 = vmatpush2.msra.mxu0 0.0
        %675 = vmatprep.subr.mxu0 0.0
        %676 = vmatpush2.msra.mxu0 0.0
        %677 = vmatprep.subr.mxu0 0.0
        %678 = vmatpush2.msra.mxu0 0.0
        %679 = vmatprep.subr.mxu0 0.0
        %680 = vmatpush2.msra.mxu0 0.0
        %681 = vmatprep.subr.mxu0 0.0
        %682 = vmatpush2.msra.mxu0 0.0
        %683 = vmatprep.subr.mxu0 0.0
        %684 = vmatpush2.msra.mxu0 0.0
        %685 = vmatprep.subr.mxu0 0.0
        %686 = vmatpush2.msra.mxu0 0.0
        %687 = vmatprep.subr.mxu0 0.0
        %688 = vmatpush2.msra.mxu0 0.0
        %689 = vmatprep.subr.mxu0 0.0
        %690 = vmatpush2.msra.mxu0 0.0
        %691 = vmatprep.mubr.f32.mxu0 0.0
        %692 = vmatmul.mubr.f32.gmra.mxu0 %v625
        %v693 = vpop.f32.mrf.mxu0
        %v694 = vadd.f32 0.0, %v693
        %v695 = vpop.f32.mrf.mxu0
        %696 = vdwg.mxu0
        %v698 = vsel %vm315, %v694, 0
        %700 = vmatprep.subr.mxu0 0.0
        %701 = vmatpush1.msra.mxu0 0.0
        %702 = vmatprep.subr.mxu0 0.0
        %703 = vmatpush1.msra.mxu0 0.0
        %704 = vmatprep.subr.mxu0 0.0
        %705 = vmatpush1.msra.mxu0 0.0
        %706 = vmatprep.subr.mxu0 0.0
        %707 = vmatpush1.msra.mxu0 0.0
        %708 = vmatprep.subr.mxu0 0.0
        %709 = vmatpush1.msra.mxu0 0.0
        %710 = vmatprep.subr.mxu0 0.0
        %711 = vmatpush1.msra.mxu0 0.0
        %712 = vmatprep.subr.mxu0 0.0
        %713 = vmatpush1.msra.mxu0 0.0
        %714 = vmatprep.subr.mxu0 0.0
        %715 = vmatpush1.msra.mxu0 0.0
        %716 = vmatprep.subr.mxu0 0.0
        %717 = vmatpush1.msra.mxu0 0.0
        %718 = vmatprep.subr.mxu0 0.0
        %719 = vmatpush1.msra.mxu0 0.0
        %720 = vmatprep.subr.mxu0 0.0
        %721 = vmatpush1.msra.mxu0 0.0
        %722 = vmatprep.subr.mxu0 0.0
        %723 = vmatpush1.msra.mxu0 0.0
        %724 = vmatprep.subr.mxu0 0.0
        %725 = vmatpush1.msra.mxu0 %v314
        %726 = vmatprep.subr.mxu0 0.0
        %727 = vmatpush1.msra.mxu0 %v313
        %728 = vmatprep.subr.mxu0 0.0
        %729 = vmatpush1.msra.mxu0 %v312
        %730 = vmatprep.subr.mxu0 0.0
        %731 = vmatpush1.msra.mxu0 %v311
        %732 = vmatprep.subr.mxu0 0.0
        %733 = vmatpush2.msra.mxu0 0.0
        %734 = vmatprep.subr.mxu0 0.0
        %735 = vmatpush2.msra.mxu0 0.0
        %736 = vmatprep.subr.mxu0 0.0
        %737 = vmatpush2.msra.mxu0 0.0
        %738 = vmatprep.subr.mxu0 0.0
        %739 = vmatpush2.msra.mxu0 0.0
        %740 = vmatprep.subr.mxu0 0.0
        %741 = vmatpush2.msra.mxu0 0.0
        %742 = vmatprep.subr.mxu0 0.0
        %743 = vmatpush2.msra.mxu0 0.0
        %744 = vmatprep.subr.mxu0 0.0
        %745 = vmatpush2.msra.mxu0 0.0
        %746 = vmatprep.subr.mxu0 0.0
        %747 = vmatpush2.msra.mxu0 0.0
        %748 = vmatprep.subr.mxu0 0.0
        %749 = vmatpush2.msra.mxu0 0.0
        %750 = vmatprep.subr.mxu0 0.0
        %751 = vmatpush2.msra.mxu0 0.0
        %752 = vmatprep.subr.mxu0 0.0
        %753 = vmatpush2.msra.mxu0 0.0
        %754 = vmatprep.subr.mxu0 0.0
        %755 = vmatpush2.msra.mxu0 0.0
        %756 = vmatprep.subr.mxu0 0.0
        %757 = vmatpush2.msra.mxu0 0.0
        %758 = vmatprep.subr.mxu0 0.0
        %759 = vmatpush2.msra.mxu0 0.0
        %760 = vmatprep.subr.mxu0 0.0
        %761 = vmatpush2.msra.mxu0 0.0
        %762 = vmatprep.subr.mxu0 0.0
        %763 = vmatpush2.msra.mxu0 0.0
        %764 = vmatprep.mubr.f32.mxu0 0.0
        %765 = vmatmul.mubr.f32.gmra.mxu0 %v698
        %v766 = vpop.f32.mrf.mxu0
        %v767 = vadd.f32 0.0, %v766
        %v768 = vpop.f32.mrf.mxu0
        %769 = vdwg.mxu0
        %770 = vst.msk [vmem:[%s297] sm:$0xff] %vm315, %v767
        %s771 = sand.u32 %s142, 1
        %s772 = scalar_lea.sflag [#allocation4], %s771
        %s773 = sand.u32 %s142, 1
        %s774 = smul.addr %s773, 8
        %s775 = scalar_lea.vmem [#allocation11], %s774
        // Predicated region
        $region61: #{tpu_custom_call.1} parent=39 // pred_check
          %p776 = pneg %p152
        $region62: #{tpu_custom_call.1} parent=39 // pred_check_branch
          %778 = sbr.rel (%p776) target = $region64
        $region63: #{tpu_custom_call.1} parent=39 // pred_region
          %s780 = ssub.s32 128, 128
          %781 = vsyncadd %s772, %s780
          %s782 = smul.addr %s24, 128
          %s783 = scalar_lea.hbm %s5, %s782
          %s785 = sshll.u32 %s775, 4
          %s786 = int_to_ptr.vmem [resolvable:$true] %s785
          %788 = dma.vmem_to_hbm [thread:$0]  %s786, 128, %s783, %s772
        $region64: #{tpu_custom_call.1} parent=39 // pred_fallthru
          _
      $region40: #{tpu_custom_call.1} parent=5 // pred_fallthru
        _
      %p789 = scmp.le.s32.totalorder 2, %s19
      // Predicated region
      $region65: #{tpu_custom_call.1} parent=5 // pred_check
        %p790 = pneg %p789
      $region66: #{tpu_custom_call.1} parent=5 // pred_check_branch
        %792 = sbr.rel (%p790) target = $region68
      $region67: #{tpu_custom_call.1} parent=5 // pred_region
        %s793 = ssub.s32 %s19, 2
        // Predicated region
        $region69: #{tpu_custom_call.1} parent=67 // pred_check
          %p794 = pneg %p158
        $region70: #{tpu_custom_call.1} parent=67 // pred_check_branch
          %796 = sbr.rel (%p794) target = $region72
        $region71: #{tpu_custom_call.1} parent=67 // pred_region
          %s797 = sand.u32 %s143, 1
          %s798 = scalar_lea.sflag [#allocation4], %s797
          %s799 = sand.u32 %s143, 1
          %s800 = smul.addr %s799, 8
          %s801 = scalar_lea.vmem [#allocation11], %s800
          %802 = dma.done %s798, 128
        $region72: #{tpu_custom_call.1} parent=67 // pred_fallthru
          _
      $region68: #{tpu_custom_call.1} parent=5 // pred_fallthru
        _
    $region6: #{tpu_custom_call.1} parent=1 // loop_footer
      %s23 = sadd.s32 1, %s19
    $region7: #{tpu_custom_call.1} parent=1 // loop_footer_branch
      %18 = sbr.rel target = $region3
    $region8: #{tpu_custom_call.1} parent=1 // loop_exit
      _
    %803 = vsyncpa [#allocation3], 1
    %s804 = scalar_lea.sflag [#allocation3], 1
    %805 = vsyncpa %s804, 1
    %806 = vsyncpa [#allocation6], 1
    %807 = vsyncpa [#allocation9], 1
    %808 = vsyncpa [#allocation4], 1
    %s809 = scalar_lea.sflag [#allocation4], 1
    %810 = vsyncpa %s809, 1

</llo_original>
